<compile_context>
chip_gen: v5e
topology: v5e:2x2
jax: 0.10.0
libtpu: 0.0.40
codegen_flags: <defaults>
</compile_context>

<pallas_src>
import jax
import jax.numpy as jnp
from jax import lax
from jax.experimental import pallas as pl
from jax.experimental.pallas import tpu as pltpu


_INV_SQRT2 = 0.7071067811865476


def _gelu_exact_f32(y):
    # Exact GELU (PyTorch nn.GELU default): 0.5 * y * (1 + erf(y / sqrt(2))), in f32.
    return 0.5 * y * (1.0 + lax.erf(y * jnp.float32(_INV_SQRT2)))


def projection_head_kernel(x_ref, w_ref, b_ref, o_ref, acc_ref):
    k = pl.program_id(2)

    @pl.when(k == 0)
    def _():
        # Fold bias into the accumulator init: one broadcast, no per-step VPU add.
        acc_ref[...] = jnp.broadcast_to(
            b_ref[...].astype(jnp.float32), acc_ref.shape)

    # MXU matmul, f32 accumulation (inputs may be bf16 for v6e/v7x MXU rate).
    acc_ref[...] += jnp.dot(x_ref[...], w_ref[...],
                            preferred_element_type=jnp.float32)

    @pl.when(k == pl.num_programs(2) - 1)
    def _():
        # f32 epilogue (exact erf GELU); cast only at the final store.
        o_ref[...] = _gelu_exact_f32(acc_ref[...]).astype(o_ref.dtype)


def _round_up(x, m):
    return ((x + m - 1) // m) * m


def projection_head(x, weight_t, bias, *, mxu_dtype=jnp.bfloat16,
                    tm=256, tn=512, tk=512):
    """Linear(input_dim, proj_dim) followed by exact GELU.

    x:        [B, D_in]  (features last)
    weight_t: [D_in, D_out]  (transpose of PyTorch's [out, in] weight)
    bias:     [D_out]
    Returns   [B, D_out] in x.dtype.
    """
    B, D_in = x.shape
    D_out = weight_t.shape[1]
    out_dtype = x.dtype

    # Lane-dense tiles: N/K multiples of 128, M multiple of 8; clip to the
    # problem size so tiny shapes remain a single block.
    tm = min(_round_up(B, 8), tm)
    tk = min(_round_up(D_in, 128), tk)
    tn = min(_round_up(D_out, 128), tn)

    Mp = _round_up(B, tm)
    Kp = _round_up(D_in, tk)
    Np = _round_up(D_out, tn)

    # Zero-pad to tile multiples. Padded K contributes 0 to the accumulation;
    # padded output rows/cols are sliced off below.
    xp = jnp.zeros((Mp, Kp), mxu_dtype).at[:B, :D_in].set(x.astype(mxu_dtype))
    wp = jnp.zeros((Kp, Np), mxu_dtype).at[:D_in, :D_out].set(
        weight_t.astype(mxu_dtype))
    bp = jnp.zeros((1, Np), jnp.float32).at[0, :D_out].set(
        bias.astype(jnp.float32))

    grid = (Mp // tm, Np // tn, Kp // tk)

    cost = pl.CostEstimate(
        flops=2 * Mp * Kp * Np,
        transcendentals=Mp * Np,
        bytes_accessed=(xp.size * xp.dtype.itemsize
                        + wp.size * wp.dtype.itemsize
                        + bp.size * 4
                        + Mp * Np * jnp.dtype(out_dtype).itemsize),
    )

    out = pl.pallas_call(
        projection_head_kernel,
        out_shape=jax.ShapeDtypeStruct((Mp, Np), out_dtype),
        grid_spec=pltpu.PrefetchScalarGridSpec(
            num_scalar_prefetch=0,
            grid=grid,
            in_specs=[
                pl.BlockSpec((tm, tk), lambda i, j, k: (i, k)),   # x tile
                pl.BlockSpec((tk, tn), lambda i, j, k: (k, j)),   # W tile
                pl.BlockSpec((1, tn), lambda i, j, k: (0, j)),    # bias (N only)
            ],
            out_specs=pl.BlockSpec((tm, tn), lambda i, j, k: (i, j)),
            scratch_shapes=[pltpu.VMEM((tm, tn), jnp.float32)],   # f32 accumulator
        ),
        compiler_params=pltpu.CompilerParams(
            dimension_semantics=("parallel", "parallel", "arbitrary"),
            vmem_limit_bytes=32 * 1024 * 1024,
        ),
        cost_estimate=cost,
    )(xp, wp, bp)

    return out[:B, :D_out]


def reference(x, weight_t, bias):
    y = jnp.dot(x, weight_t, precision=lax.Precision.HIGHEST) + bias
    return 0.5 * y * (1.0 + lax.erf(y * jnp.float32(_INV_SQRT2)))


if __name__ == "__main__":
    key = jax.random.PRNGKey(0)

    # --- Test 1: module-sized small shape, exact-f32 MXU path, tight tolerance.
    B, D_in, D_out = 8, 32, 128
    kx, kw, kb = jax.random.split(key, 3)
    bound = 1.0 / jnp.sqrt(jnp.float32(D_in))
    x = jax.random.normal(kx, (B, D_in), dtype=jnp.float32)
    w_t = jax.random.uniform(kw, (D_in, D_out), jnp.float32, -bound, bound)
    b = jax.random.uniform(kb, (D_out,), jnp.float32, -bound, bound)

    ref = reference(x, w_t, b)

    out_f32 = jax.block_until_ready(
        projection_head(x, w_t, b, mxu_dtype=jnp.float32))
    assert out_f32.shape == (B, D_out)
    assert jnp.allclose(out_f32, ref, atol=1e-5, rtol=1e-5), "f32 path mismatch"

    # --- Test 2: default bf16-MXU path (v6e/v7x friendly), looser tolerance.
    out_bf16 = jax.block_until_ready(projection_head(x, w_t, b))
    assert out_bf16.shape == (B, D_out)
    assert jnp.allclose(out_bf16, ref, atol=3e-2, rtol=3e-2), "bf16 path mismatch"

    # --- Test 3: multi-tile grid (exercises M/N/K tiling + K accumulator).
    B2, Din2, Dout2 = 264, 640, 384
    ks = jax.random.split(key, 6)
    bound2 = 1.0 / jnp.sqrt(jnp.float32(Din2))
    x2 = jax.random.normal(ks[3], (B2, Din2), dtype=jnp.float32)
    w2 = jax.random.uniform(ks[4], (Din2, Dout2), jnp.float32, -bound2, bound2)
    b2 = jax.random.uniform(ks[5], (Dout2,), jnp.float32, -bound2, bound2)

    out2 = jax.block_until_ready(
        projection_head(x2, w2, b2, mxu_dtype=jnp.float32,
                        tm=128, tn=256, tk=256))
    ref2 = reference(x2, w2, b2)
    assert out2.shape == (B2, Dout2)
    assert jnp.allclose(out2, ref2, atol=1e-3, rtol=1e-3), "tiled path mismatch"

    print("KERNEL_OK")
</pallas_src>

<mosaic_0001>
module attributes {stable_mosaic.version = 11 : i64} {
  func.func @projection_head_kernel(%arg0: i32, %arg1: i32, %arg2: i32, %arg3: memref<8x128xf32, #tpu.memory_space<vmem>>, %arg4: memref<128x128xf32, #tpu.memory_space<vmem>>, %arg5: memref<1x128xf32, #tpu.memory_space<vmem>>, %arg6: memref<8x128xf32, #tpu.memory_space<vmem>>, %arg7: memref<8x128xf32, #tpu.memory_space<vmem>>) attributes {dimension_semantics = [#tpu.dimension_semantics<parallel>, #tpu.dimension_semantics<parallel>, #tpu.dimension_semantics<arbitrary>], iteration_bounds = array<i64: 1, 1, 1>, scalar_prefetch = 0 : i64, scratch_operands = 1 : i64, tpu.core_type = #tpu.core_type<tc>, window_params = [{transform_indices = @transform_0, window_bounds = array<i64: 8, 128>}, {transform_indices = @transform_1, window_bounds = array<i64: 128, 128>}, {transform_indices = @transform_2, window_bounds = array<i64: 1, 128>}, {transform_indices = @transform_3, window_bounds = array<i64: 8, 128>}]} {
    %c0_i32 = arith.constant 0 : i32
    %0 = arith.cmpi eq, %arg2, %c0_i32 : i32
    %1 = arith.extui %0 : i1 to i32
    %c0_i32_0 = arith.constant 0 : i32
    %2 = arith.cmpi ne, %1, %c0_i32_0 : i32
    scf.if %2 {
      %c0_10 = arith.constant 0 : index
      %c0_11 = arith.constant 0 : index
      %12 = vector.load %arg5[%c0_10, %c0_11] : memref<1x128xf32, #tpu.memory_space<vmem>>, vector<1x128xf32>
      %13 = vector.shape_cast %12 : vector<1x128xf32> to vector<1x128xf32>
      %14 = vector.broadcast %13 : vector<1x128xf32> to vector<8x128xf32>
      %c0_12 = arith.constant 0 : index
      %c0_13 = arith.constant 0 : index
      %15 = vector.load %arg7[%c0_12, %c0_13] : memref<8x128xf32, #tpu.memory_space<vmem>>, vector<8x128xf32>
      tpu.vector_store %arg7[%c0_12, %c0_13], %14 {strides = array<i32>} : memref<8x128xf32, #tpu.memory_space<vmem>>, vector<8x128xf32>,
    } else {
    }
    %c0 = arith.constant 0 : index
    %c0_1 = arith.constant 0 : index
    %3 = vector.load %arg7[%c0, %c0_1] : memref<8x128xf32, #tpu.memory_space<vmem>>, vector<8x128xf32>
    %c0_2 = arith.constant 0 : index
    %c0_3 = arith.constant 0 : index
    %4 = vector.load %arg3[%c0_2, %c0_3] : memref<8x128xf32, #tpu.memory_space<vmem>>, vector<8x128xf32>
    %c0_4 = arith.constant 0 : index
    %c0_5 = arith.constant 0 : index
    %5 = vector.load %arg4[%c0_4, %c0_5] : memref<128x128xf32, #tpu.memory_space<vmem>>, vector<128x128xf32>
    %cst = arith.constant dense<0.000000e+00> : vector<8x128xf32>
    %6 = tpu.matmul %4, %5, %cst {dimension_numbers = #tpu.dot_dimension_numbers<[1], [0], [0], [1], [0, 0, 1, 1], [], []>} : vector<8x128xf32>, vector<128x128xf32>, vector<8x128xf32> -> vector<8x128xf32>
    %7 = arith.addf %3, %6 : vector<8x128xf32>
    %c0_6 = arith.constant 0 : index
    %c0_7 = arith.constant 0 : index
    %8 = vector.load %arg7[%c0_6, %c0_7] : memref<8x128xf32, #tpu.memory_space<vmem>>, vector<8x128xf32>
    tpu.vector_store %arg7[%c0_6, %c0_7], %7 {strides = array<i32>} : memref<8x128xf32, #tpu.memory_space<vmem>>, vector<8x128xf32>,
    %c0_i32_8 = arith.constant 0 : i32
    %9 = arith.cmpi eq, %arg2, %c0_i32_8 : i32
    %10 = arith.extui %9 : i1 to i32
    %c0_i32_9 = arith.constant 0 : i32
    %11 = arith.cmpi ne, %10, %c0_i32_9 : i32
    scf.if %11 {
      %c0_10 = arith.constant 0 : index
      %c0_11 = arith.constant 0 : index
      %12 = vector.load %arg7[%c0_10, %c0_11] : memref<8x128xf32, #tpu.memory_space<vmem>>, vector<8x128xf32>
      %cst_12 = arith.constant 5.000000e-01 : f32
      %13 = vector.broadcast %cst_12 : f32 to vector<8x128xf32>
      %14 = arith.mulf %13, %12 : vector<8x128xf32>
      %cst_13 = arith.constant 0.707106769 : f32
      %15 = vector.broadcast %cst_13 : f32 to vector<8x128xf32>
      %16 = arith.mulf %12, %15 : vector<8x128xf32>
      %17 = math.erf %16 : vector<8x128xf32>
      %cst_14 = arith.constant 1.000000e+00 : f32
      %18 = vector.broadcast %cst_14 : f32 to vector<8x128xf32>
      %19 = arith.addf %18, %17 : vector<8x128xf32>
      %20 = arith.mulf %14, %19 : vector<8x128xf32>
      %c0_15 = arith.constant 0 : index
      %c0_16 = arith.constant 0 : index
      %21 = vector.load %arg6[%c0_15, %c0_16] : memref<8x128xf32, #tpu.memory_space<vmem>>, vector<8x128xf32>
      tpu.vector_store %arg6[%c0_15, %c0_16], %20 {strides = array<i32>} : memref<8x128xf32, #tpu.memory_space<vmem>>, vector<8x128xf32>,
    } else {
    }
    return
  }
  func.func @transform_0(%arg0: i32, %arg1: i32, %arg2: i32) -> (i32, i32) {
    %c0_i32 = arith.constant 0 : i32
    return %arg0, %arg2 : i32, i32
  }
  func.func @transform_1(%arg0: i32, %arg1: i32, %arg2: i32) -> (i32, i32) {
    %c0_i32 = arith.constant 0 : i32
    return %arg2, %arg1 : i32, i32
  }
  func.func @transform_2(%arg0: i32, %arg1: i32, %arg2: i32) -> (i32, i32) {
    %c0_i32 = arith.constant 0 : i32
    %c0_i32_0 = arith.constant 0 : i32
    return %c0_i32, %arg1 : i32, i32
  }
  func.func @transform_3(%arg0: i32, %arg1: i32, %arg2: i32) -> (i32, i32) {
    %c0_i32 = arith.constant 0 : i32
    return %arg0, %arg1 : i32, i32
  }
}

</mosaic_0001>

<llo_original>
// kernel: tpu_custom_call.1
$region0: #{tpu_custom_call.1}
  #allocation0 [shape = 'u32[]', space=smem, size = 0x4, offset = 0x4, fixed_abs, tag = 'smem constant byte address 0x4 - core index']
  #allocation1 [shape = 'u32[72,128]{1,0:T(1,128)}', space=vmem, size = 0x9000, scoped, tag = 'internal scratch']
  #allocation2 [shape = 'f32[8,128]{1,0:T(8,128)}', space=vmem, size = 0x1000, scoped, tag = 'scratch operand']
  %s0 = inlined_call_operand.hbm [shape: f32[8,128], index: 0, kind: input, shape index: {}]
  %s1 = inlined_call_operand.hbm [shape: f32[128,128], index: 1, kind: input, shape index: {}]
  %s2 = inlined_call_operand.vmem [shape: f32[1,128], index: 2, kind: input, shape index: {}]
  %s3 = inlined_call_operand.hbm [shape: f32[8,128], index: 3, kind: output, shape index: {}]
  %s4 = sld [smem:[#allocation0]]
  $region38: #{tpu_custom_call.1} parent=0
    _
  %s6 = ssub.s32 1, %s4
  %s7 = scalar_select 0, %s6, %s4
  $region1: #{tpu_custom_call.1} parent=0
    #allocation3 [shape = 'u8[4096]{0}', space=vmem, size = 0x1000, scoped, tag = 'input window, operand 0, single buffered']
    #allocation4 [shape = 's32[1]{0}', space=sflag, size = 0x4, scoped, tag = 'scoped memory for tpu_custom_call.1']
    #allocation5 [shape = 's32[1]{0}', space=sflag, size = 0x4, scoped, tag = 'scoped memory for tpu_custom_call.1']
    #allocation6 [shape = 'u8[65536]{0}', space=vmem, size = 0x10000, scoped, tag = 'input window, operand 1, single buffered']
    #allocation7 [shape = 's32[1]{0}', space=sflag, size = 0x4, scoped, tag = 'scoped memory for tpu_custom_call.1']
    #allocation8 [shape = 'u8[4096]{0}', space=vmem, size = 0x1000, scoped, tag = 'output window, operand 0, single buffered']
    %8 = vsyncpa [#allocation4], 0
    %9 = vsyncpa [#allocation7], 0
    %10 = vsyncpa [#allocation5], 0
    // Predicated region
    $region2: #{tpu_custom_call.1} parent=1 // pred_check
      _
    $region3: #{tpu_custom_call.1} parent=1 // pred_check_branch
      %12 = sbr.rel (0) target = $region5
    $region4: #{tpu_custom_call.1} parent=1 // pred_region
      %14 = vsyncadd [#allocation4], 0
      %s16 = sshll.u32 %s0, 4
      %s17 = int_to_ptr.hbm [resolvable:$true] %s16
      %s18 = sshll.u32 [#allocation3], 4
      %s19 = int_to_ptr.vmem [resolvable:$true] %s18
      %21 = dma.hbm_to_vmem [thread:$0]  %s17, 128, %s19, [#allocation4]
    $region5: #{tpu_custom_call.1} parent=1 // pred_fallthru
      _
    // Predicated region
    $region6: #{tpu_custom_call.1} parent=1 // pred_check
      _
    $region7: #{tpu_custom_call.1} parent=1 // pred_check_branch
      %23 = sbr.rel (0) target = $region9
    $region8: #{tpu_custom_call.1} parent=1 // pred_region
      %25 = vsyncadd [#allocation7], 0
      %s26 = sshll.u32 %s1, 4
      %s27 = int_to_ptr.hbm [resolvable:$true] %s26
      %s28 = sshll.u32 [#allocation6], 4
      %s29 = int_to_ptr.vmem [resolvable:$true] %s28
      %34 = dma.hbm_to_vmem [thread:$0]  %s27, 2048, %s29, [#allocation7], 128, 128, 8
    $region9: #{tpu_custom_call.1} parent=1 // pred_fallthru
      _
    // Predicated region
    $region10: #{tpu_custom_call.1} parent=1 // pred_check
      _
    $region11: #{tpu_custom_call.1} parent=1 // pred_check_branch
      %36 = sbr.rel (0) target = $region13
    $region12: #{tpu_custom_call.1} parent=1 // pred_region
      _
    $region13: #{tpu_custom_call.1} parent=1 // pred_fallthru
      _
    // Predicated region
    $region14: #{tpu_custom_call.1} parent=1 // pred_check
      _
    $region15: #{tpu_custom_call.1} parent=1 // pred_check_branch
      %38 = sbr.rel (0) target = $region17
    $region16: #{tpu_custom_call.1} parent=1 // pred_region
      %40 = dma.done [#allocation4], 128
    $region17: #{tpu_custom_call.1} parent=1 // pred_fallthru
      _
    // Predicated region
    $region18: #{tpu_custom_call.1} parent=1 // pred_check
      _
    $region19: #{tpu_custom_call.1} parent=1 // pred_check_branch
      %42 = sbr.rel (0) target = $region21
    $region20: #{tpu_custom_call.1} parent=1 // pred_region
      %44 = dma.done [#allocation7], 2048
    $region21: #{tpu_custom_call.1} parent=1 // pred_fallthru
      _
    %p45 = scmp.eq.s32.totalorder 0, 0
    // Predicated region
    $region22: #{tpu_custom_call.1} parent=1 // pred_check
      %p46 = pneg %p45
    $region23: #{tpu_custom_call.1} parent=1 // pred_check_branch
      %48 = sbr.rel (%p46) target = $region25
    $region24: #{tpu_custom_call.1} parent=1 // pred_region
      %v49 = vld [vmem:[%s2] sm:$0x1]
      %v51 = vperm.slane %v49, 0
      %53 = vst [vmem:[#allocation2] sm:$0xff] %v51
    $region25: #{tpu_custom_call.1} parent=1 // pred_fallthru
      _
    %v54 = vld [vmem:[#allocation2] sm:$0xff]
    %v55 = vld [vmem:[#allocation3] sm:$0xff]
    %v56 = vld [vmem:[#allocation6] sm:$0xff]
    %v57 = vld [vmem:[#allocation6 + $0x8] sm:$0xff]
    %v58 = vld [vmem:[#allocation6 + $0x10] sm:$0xff]
    %v59 = vld [vmem:[#allocation6 + $0x18] sm:$0xff]
    %v60 = vld [vmem:[#allocation6 + $0x20] sm:$0xff]
    %v61 = vld [vmem:[#allocation6 + $0x28] sm:$0xff]
    %v62 = vld [vmem:[#allocation6 + $0x30] sm:$0xff]
    %v63 = vld [vmem:[#allocation6 + $0x38] sm:$0xff]
    %v64 = vld [vmem:[#allocation6 + $0x40] sm:$0xff]
    %v65 = vld [vmem:[#allocation6 + $0x48] sm:$0xff]
    %v66 = vld [vmem:[#allocation6 + $0x50] sm:$0xff]
    %v67 = vld [vmem:[#allocation6 + $0x58] sm:$0xff]
    %v68 = vld [vmem:[#allocation6 + $0x60] sm:$0xff]
    %v69 = vld [vmem:[#allocation6 + $0x68] sm:$0xff]
    %v70 = vld [vmem:[#allocation6 + $0x70] sm:$0xff]
    %v71 = vld [vmem:[#allocation6 + $0x78] sm:$0xff]
    %72 = vmatpush.msra.mxu0 %v71
    %73 = vmatpush.msra.mxu0 %v70
    %74 = vmatpush.msra.mxu0 %v69
    %75 = vmatpush.msra.mxu0 %v68
    %76 = vmatpush.msra.mxu0 %v67
    %77 = vmatpush.msra.mxu0 %v66
    %78 = vmatpush.msra.mxu0 %v65
    %79 = vmatpush.msra.mxu0 %v64
    %80 = vmatpush.msra.mxu0 %v63
    %81 = vmatpush.msra.mxu0 %v62
    %82 = vmatpush.msra.mxu0 %v61
    %83 = vmatpush.msra.mxu0 %v60
    %84 = vmatpush.msra.mxu0 %v59
    %85 = vmatpush.msra.mxu0 %v58
    %86 = vmatpush.msra.mxu0 %v57
    %87 = vmatpush.msra.mxu0 %v56
    %88 = vmatmul.f32.gmra.mxu0 %v55
    %v89 = vpop.f32.mrf.mxu0
    %v90 = vadd.f32 0.0, %v89
    %91 = vdwg.mxu0
    %v92 = vadd.f32 %v54, %v90
    %93 = vst [vmem:[#allocation2] sm:$0xff] %v92
    // Predicated region
    $region26: #{tpu_custom_call.1} parent=1 // pred_check
      %p94 = pneg %p45
    $region27: #{tpu_custom_call.1} parent=1 // pred_check_branch
      %96 = sbr.rel (%p94) target = $region29
    $region28: #{tpu_custom_call.1} parent=1 // pred_region
      %v97 = vld [vmem:[#allocation2] sm:$0xff]
      %v98 = vmul.f32 %v97, 0.5
      %v99 = vmul.f32 %v97, 0.70710677
      %v100 = vmul.f32 %v99, %v99
      %v101 = vmin.f32 16.0, %v100
      %v102 = vmul.f32 %v101, 2.1237322e-06
      %v103 = vadd.f32 %v102, 0.00028619796
      %v104 = vmul.f32 %v101, %v103
      %v105 = vadd.f32 %v104, 0.0036580483
      %v106 = vmul.f32 %v101, %v105
      %v107 = vadd.f32 %v106, 0.05243302
      %v108 = vmul.f32 %v101, %v107
      %v109 = vadd.f32 %v108, 0.18741608
      %v110 = vmul.f32 %v101, %v109
      %v111 = vadd.f32 %v110, 1.1283791
      %v112 = vmul.f32 %v99, %v111
      %v113 = vmul.f32 %v101, 3.8918573e-05
      %v114 = vadd.f32 %v113, 0.001143296
      %v115 = vmul.f32 %v101, %v114
      %v116 = vadd.f32 %v115, 0.014752088
      %v117 = vmul.f32 %v101, %v116
      %v118 = vadd.f32 %v117, 0.112945676
      %v119 = vmul.f32 %v101, %v118
      %v120 = vadd.f32 %v119, 0.4994258
      %v121 = vmul.f32 %v101, %v120
      %v122 = vadd.f32 %v121, 1.0
      %v123 = vrcp.pop %v122
      %v124 = vmul.f32 %v122, %v123
      %v125 = vsub.f32 1.0, %v124
      %v126 = vmul.f32 %v123, %v125
      %v127 = vadd.f32 %v123, %v126
      %vm128 = vweird.f32 %v122
      %vm129 = vweird.f32 %v123
      %vm130 = vmor %vm128, %vm129
      %v131 = vsel %vm130, %v123, %v127
      %v132 = vand.u32 2147483647, %v122
      %vm133 = vcmp.eq.f32.partialorder %v132, 8.507059e+37
      %v134 = vand.u32 %v122, 2147483648
      %v135 = vor.u32 1.1754944e-38, %v134
      %v136 = vsel %vm133, %v135, %v131
      %v137 = vmul.f32 %v112, %v136
      %v138 = vmin.f32 %v137, 1.0
      %v139 = vmax.f32 %v138, -1.0
      %v140 = vadd.f32 %v139, 1.0
      %v141 = vmul.f32 %v98, %v140
      %142 = vst [vmem:[#allocation8] sm:$0xff] %v141
    $region29: #{tpu_custom_call.1} parent=1 // pred_fallthru
      _
    // Predicated region
    $region30: #{tpu_custom_call.1} parent=1 // pred_check
      _
    $region31: #{tpu_custom_call.1} parent=1 // pred_check_branch
      %144 = sbr.rel (0) target = $region33
    $region32: #{tpu_custom_call.1} parent=1 // pred_region
      %146 = vsyncadd [#allocation5], 0
      %s148 = sshll.u32 [#allocation8], 4
      %s149 = int_to_ptr.vmem [resolvable:$true] %s148
      %s150 = sshll.u32 %s3, 4
      %s151 = int_to_ptr.hbm [resolvable:$true] %s150
      %153 = dma.vmem_to_hbm [thread:$0]  %s149, 128, %s151, [#allocation5]
    $region33: #{tpu_custom_call.1} parent=1 // pred_fallthru
      _
    // Predicated region
    $region34: #{tpu_custom_call.1} parent=1 // pred_check
      _
    $region35: #{tpu_custom_call.1} parent=1 // pred_check_branch
      %155 = sbr.rel (0) target = $region37
    $region36: #{tpu_custom_call.1} parent=1 // pred_region
      %157 = dma.done [#allocation5], 128
    $region37: #{tpu_custom_call.1} parent=1 // pred_fallthru
      _
    %158 = vsyncpa [#allocation4], 1
    %159 = vsyncpa [#allocation7], 1
    %160 = vsyncpa [#allocation5], 1

</llo_original>
